<compile_context>
chip_gen: v5e
topology: v5e:2x2
jax: 0.10.0
libtpu: 0.0.40
codegen_flags: <defaults>
</compile_context>

<pallas_src>
import math
import jax
import jax.numpy as jnp
from jax.experimental import pallas as pl
from jax.experimental.pallas import tpu as pltpu


def _get_pad(size: int, multiple: int):
    new_size = math.ceil(size / multiple) * multiple
    pad_size = new_size - size
    pad_left = pad_size // 2
    pad_right = pad_size - pad_left
    return pad_left, pad_right


def _make_kernel(H, W, pad_top, pad_bot, pad_left, pad_right):
    W_new = W + pad_left + pad_right

    def kernel(x_ref, o_ref):
        # x_ref: (bc_tile, H, W)   o_ref: (bc_tile, H_new, W_new)
        x = x_ref[...]
        bc = x.shape[0]
        dt = x.dtype
        # Build the padded block in registers; one unmasked full-tile store.
        if pad_left or pad_right:
            parts = []
            if pad_left:
                parts.append(jnp.zeros((bc, H, pad_left), dt))
            parts.append(x)
            if pad_right:
                parts.append(jnp.zeros((bc, H, pad_right), dt))
            x = jnp.concatenate(parts, axis=2)
        if pad_top or pad_bot:
            parts = []
            if pad_top:
                parts.append(jnp.zeros((bc, pad_top, W_new), dt))
            parts.append(x)
            if pad_bot:
                parts.append(jnp.zeros((bc, pad_bot, W_new), dt))
            x = jnp.concatenate(parts, axis=1)
        o_ref[...] = x

    return kernel


def center_padding(x: jax.Array, multiple: int,
                   block_bytes_budget: int = 4 * 1024 * 1024) -> jax.Array:
    """Centered zero-padding of the last two dims of NCHW `x` up to `multiple`."""
    B, C, H, W = x.shape
    pad_top, pad_bot = _get_pad(H, multiple)
    pad_left, pad_right = _get_pad(W, multiple)
    H_new = H + pad_top + pad_bot
    W_new = W + pad_left + pad_right

    if H_new == H and W_new == W:
        return x  # nothing to pad

    BC = B * C
    itemsize = jnp.dtype(x.dtype).itemsize
    per_channel_bytes = (H * W + H_new * W_new) * itemsize

    if per_channel_bytes > block_bytes_budget:
        # TODO(synk): spatial tiling for huge H*W; use XLA pad (same HBM floor).
        return jnp.pad(x, ((0, 0), (0, 0), (pad_top, pad_bot), (pad_left, pad_right)))

    # Largest divisor of B*C whose in+out block fits the (per-buffer) budget.
    max_bc = max(1, block_bytes_budget // per_channel_bytes)
    bc_tile = 1
    for d in range(min(BC, max_bc), 0, -1):
        if BC % d == 0:
            bc_tile = d
            break

    # Merging the leading (B, C) dims is a free (metadata-only) reshape.
    x2 = x.reshape(BC, H, W)
    kernel = _make_kernel(H, W, pad_top, pad_bot, pad_left, pad_right)

    out = pl.pallas_call(
        kernel,
        out_shape=jax.ShapeDtypeStruct((BC, H_new, W_new), x.dtype),
        grid_spec=pltpu.PrefetchScalarGridSpec(
            num_scalar_prefetch=0,
            grid=(BC // bc_tile,),
            in_specs=[pl.BlockSpec((bc_tile, H, W), lambda i: (i, 0, 0))],
            out_specs=pl.BlockSpec((bc_tile, H_new, W_new), lambda i: (i, 0, 0)),
        ),
        compiler_params=pltpu.CompilerParams(
            dimension_semantics=("parallel",),
            vmem_limit_bytes=32 * 1024 * 1024,
        ),
    )(x2)
    return out.reshape(B, C, H_new, W_new)


def _check(x, multiple):
    out = jax.block_until_ready(center_padding(x, multiple))
    B, C, H, W = x.shape
    pt, pb = _get_pad(H, multiple)
    plft, prgt = _get_pad(W, multiple)
    ref = jnp.pad(x, ((0, 0), (0, 0), (pt, pb), (plft, prgt)))
    assert out.shape == ref.shape, (out.shape, ref.shape)
    assert out.dtype == x.dtype
    assert jnp.allclose(out, ref), "mismatch vs reference padding"


if __name__ == "__main__":
    key = jax.random.PRNGKey(0)
    multiple = 8

    # Case 1: 13x13 -> 16x16 (symmetric-ish centered pad).
    k1, k2 = jax.random.split(key)
    x1 = jax.random.normal(k1, (2, 4, 13, 13), dtype=jnp.float32)
    _check(x1, multiple)

    # Case 2: asymmetric spatial dims, 13x10 -> 16x16.
    x2 = jax.random.normal(k2, (2, 4, 13, 10), dtype=jnp.float32)
    _check(x2, multiple)

    print("KERNEL_OK")
</pallas_src>

<mosaic_0001>
module attributes {stable_mosaic.version = 11 : i64} {
  func.func @kernel(%arg0: i32, %arg1: memref<8x13x13xf32, #tpu.memory_space<vmem>>, %arg2: memref<8x16x16xf32, #tpu.memory_space<vmem>>) attributes {dimension_semantics = [#tpu.dimension_semantics<parallel>], iteration_bounds = array<i64: 1>, scalar_prefetch = 0 : i64, scratch_operands = 0 : i64, tpu.core_type = #tpu.core_type<tc>, window_params = [{transform_indices = @transform_0, window_bounds = array<i64: 8, 13, 13>}, {transform_indices = @transform_1, window_bounds = array<i64: 8, 16, 16>}]} {
    %c0 = arith.constant 0 : index
    %c0_0 = arith.constant 0 : index
    %c0_1 = arith.constant 0 : index
    %0 = vector.load %arg1[%c0, %c0_0, %c0_1] : memref<8x13x13xf32, #tpu.memory_space<vmem>>, vector<8x13x13xf32>
    %cst = arith.constant 0.000000e+00 : f32
    %1 = vector.broadcast %cst : f32 to vector<8x13x1xf32>
    %cst_2 = arith.constant 0.000000e+00 : f32
    %2 = vector.broadcast %cst_2 : f32 to vector<8x13x2xf32>
    %3 = tpu.concatenate %1, %0, %2 in 2 : vector<8x13x1xf32>, vector<8x13x13xf32>, vector<8x13x2xf32> -> vector<8x13x16xf32>
    %cst_3 = arith.constant 0.000000e+00 : f32
    %4 = vector.broadcast %cst_3 : f32 to vector<8x1x16xf32>
    %cst_4 = arith.constant 0.000000e+00 : f32
    %5 = vector.broadcast %cst_4 : f32 to vector<8x2x16xf32>
    %6 = tpu.concatenate %4, %3, %5 in 1 : vector<8x1x16xf32>, vector<8x13x16xf32>, vector<8x2x16xf32> -> vector<8x16x16xf32>
    %c0_5 = arith.constant 0 : index
    %c0_6 = arith.constant 0 : index
    %c0_7 = arith.constant 0 : index
    %7 = vector.load %arg2[%c0_5, %c0_6, %c0_7] : memref<8x16x16xf32, #tpu.memory_space<vmem>>, vector<8x16x16xf32>
    tpu.vector_store %arg2[%c0_5, %c0_6, %c0_7], %6 {strides = array<i32>} : memref<8x16x16xf32, #tpu.memory_space<vmem>>, vector<8x16x16xf32>,
    return
  }
  func.func @transform_0(%arg0: i32) -> (i32, i32, i32) {
    %c0_i32 = arith.constant 0 : i32
    %c0_i32_0 = arith.constant 0 : i32
    %c0_i32_1 = arith.constant 0 : i32
    return %arg0, %c0_i32, %c0_i32_0 : i32, i32, i32
  }
  func.func @transform_1(%arg0: i32) -> (i32, i32, i32) {
    %c0_i32 = arith.constant 0 : i32
    %c0_i32_0 = arith.constant 0 : i32
    %c0_i32_1 = arith.constant 0 : i32
    return %arg0, %c0_i32, %c0_i32_0 : i32, i32, i32
  }
}

</mosaic_0001>

<llo_original>
// kernel: tpu_custom_call.1
$region0: #{tpu_custom_call.1}
  #allocation0 [shape = 'u32[]', space=smem, size = 0x4, offset = 0x4, fixed_abs, tag = 'smem constant byte address 0x4 - core index']
  #allocation1 [shape = 'u32[72,128]{1,0:T(1,128)}', space=vmem, size = 0x9000, scoped, tag = 'internal scratch']
  %s0 = inlined_call_operand.vmem [shape: f32[8,13,13], index: 0, kind: input, shape index: {}]
  %s1 = inlined_call_operand.hbm [shape: f32[8,16,16], index: 1, kind: output, shape index: {}]
  %s2 = sld [smem:[#allocation0]]
  $region14: #{tpu_custom_call.1} parent=0
    _
  %s4 = ssub.s32 1, %s2
  %s5 = scalar_select 0, %s4, %s2
  $region1: #{tpu_custom_call.1} parent=0
    #allocation2 [shape = 'u8[65536]{0}', space=vmem, size = 0x10000, scoped, tag = 'output window, operand 0, single buffered']
    #allocation3 [shape = 's32[1]{0}', space=sflag, size = 0x4, scoped, tag = 'scoped memory for tpu_custom_call.1']
    %6 = vsyncpa [#allocation3], 0
    // Predicated region
    $region2: #{tpu_custom_call.1} parent=1 // pred_check
      _
    $region3: #{tpu_custom_call.1} parent=1 // pred_check_branch
      %8 = sbr.rel (0) target = $region5
    $region4: #{tpu_custom_call.1} parent=1 // pred_region
      _
    $region5: #{tpu_custom_call.1} parent=1 // pred_fallthru
      _
    %v9 = vld [vmem:[%s0] sm:$0xff]
    %v10 = vld [vmem:[%s0 + $0x8] sm:$0x1f]
    %v11 = vld [vmem:[%s0 + $0x10] sm:$0xff]
    %v12 = vld [vmem:[%s0 + $0x18] sm:$0x1f]
    %v13 = vld [vmem:[%s0 + $0x20] sm:$0xff]
    %v14 = vld [vmem:[%s0 + $0x28] sm:$0x1f]
    %v15 = vld [vmem:[%s0 + $0x30] sm:$0xff]
    %v16 = vld [vmem:[%s0 + $0x38] sm:$0x1f]
    %v17 = vld [vmem:[%s0 + $0x40] sm:$0xff]
    %v18 = vld [vmem:[%s0 + $0x48] sm:$0x1f]
    %v19 = vld [vmem:[%s0 + $0x50] sm:$0xff]
    %v20 = vld [vmem:[%s0 + $0x58] sm:$0x1f]
    %v21 = vld [vmem:[%s0 + $0x60] sm:$0xff]
    %v22 = vld [vmem:[%s0 + $0x68] sm:$0x1f]
    %v23 = vld [vmem:[%s0 + $0x70] sm:$0xff]
    %v24 = vld [vmem:[%s0 + $0x78] sm:$0x1f]
    %41 = vrot.lane.b32.xlu0 %v9, 1
    %v42 = vpop.permute.xlu0 %41
    %43 = vrot.lane.b32.xlu0 %v10, 1
    %v44 = vpop.permute.xlu0 %43
    %45 = vrot.lane.b32.xlu0 %v11, 1
    %v46 = vpop.permute.xlu0 %45
    %47 = vrot.lane.b32.xlu0 %v12, 1
    %v48 = vpop.permute.xlu0 %47
    %49 = vrot.lane.b32.xlu0 %v13, 1
    %v50 = vpop.permute.xlu0 %49
    %51 = vrot.lane.b32.xlu0 %v14, 1
    %v52 = vpop.permute.xlu0 %51
    %53 = vrot.lane.b32.xlu0 %v15, 1
    %v54 = vpop.permute.xlu0 %53
    %55 = vrot.lane.b32.xlu0 %v16, 1
    %v56 = vpop.permute.xlu0 %55
    %57 = vrot.lane.b32.xlu0 %v17, 1
    %v58 = vpop.permute.xlu0 %57
    %59 = vrot.lane.b32.xlu0 %v18, 1
    %v60 = vpop.permute.xlu0 %59
    %61 = vrot.lane.b32.xlu0 %v19, 1
    %v62 = vpop.permute.xlu0 %61
    %63 = vrot.lane.b32.xlu0 %v20, 1
    %v64 = vpop.permute.xlu0 %63
    %65 = vrot.lane.b32.xlu0 %v21, 1
    %v66 = vpop.permute.xlu0 %65
    %67 = vrot.lane.b32.xlu0 %v22, 1
    %v68 = vpop.permute.xlu0 %67
    %69 = vrot.lane.b32.xlu0 %v23, 1
    %v70 = vpop.permute.xlu0 %69
    %71 = vrot.lane.b32.xlu0 %v24, 1
    %v72 = vpop.permute.xlu0 %71
    %vm89 = vcmask 7168
    %v90 = vsel %vm89, 0.0, %v42
    %v91 = vsel %vm89, 0.0, %v44
    %v92 = vsel %vm89, 0.0, %v46
    %v93 = vsel %vm89, 0.0, %v48
    %v94 = vsel %vm89, 0.0, %v50
    %v95 = vsel %vm89, 0.0, %v52
    %v96 = vsel %vm89, 0.0, %v54
    %v97 = vsel %vm89, 0.0, %v56
    %v98 = vsel %vm89, 0.0, %v58
    %v99 = vsel %vm89, 0.0, %v60
    %v100 = vsel %vm89, 0.0, %v62
    %v101 = vsel %vm89, 0.0, %v64
    %v102 = vsel %vm89, 0.0, %v66
    %v103 = vsel %vm89, 0.0, %v68
    %v104 = vsel %vm89, 0.0, %v70
    %v105 = vsel %vm89, 0.0, %v72
    %vm106 = vcmask 113664
    %v107 = vsel %vm106, %v90, 0.0
    %v108 = vsel %vm106, %v91, 0.0
    %v109 = vsel %vm106, %v92, 0.0
    %v110 = vsel %vm106, %v93, 0.0
    %v111 = vsel %vm106, %v94, 0.0
    %v112 = vsel %vm106, %v95, 0.0
    %v113 = vsel %vm106, %v96, 0.0
    %v114 = vsel %vm106, %v97, 0.0
    %v115 = vsel %vm106, %v98, 0.0
    %v116 = vsel %vm106, %v99, 0.0
    %v117 = vsel %vm106, %v100, 0.0
    %v118 = vsel %vm106, %v101, 0.0
    %v119 = vsel %vm106, %v102, 0.0
    %v120 = vsel %vm106, %v103, 0.0
    %v121 = vsel %vm106, %v104, 0.0
    %v122 = vsel %vm106, %v105, 0.0
    %vm139 = vcmask 1040384
    %v140 = vrot.slane %v107, 7
    %v141 = vrot.slane %v108, 7
    %v142 = vsel %vm139, %v140, %v141
    %v143 = vrot.slane %v109, 7
    %v144 = vrot.slane %v110, 7
    %v145 = vsel %vm139, %v143, %v144
    %v146 = vrot.slane %v111, 7
    %v147 = vrot.slane %v112, 7
    %v148 = vsel %vm139, %v146, %v147
    %v149 = vrot.slane %v113, 7
    %v150 = vrot.slane %v114, 7
    %v151 = vsel %vm139, %v149, %v150
    %v152 = vrot.slane %v115, 7
    %v153 = vrot.slane %v116, 7
    %v154 = vsel %vm139, %v152, %v153
    %v155 = vrot.slane %v117, 7
    %v156 = vrot.slane %v118, 7
    %v157 = vsel %vm139, %v155, %v156
    %v158 = vrot.slane %v119, 7
    %v159 = vrot.slane %v120, 7
    %v160 = vsel %vm139, %v158, %v159
    %v161 = vrot.slane %v121, 7
    %v162 = vrot.slane %v122, 7
    %v163 = vsel %vm139, %v161, %v162
    %v180 = vsel %vm139, 0.0, %v140
    %v181 = vsel %vm139, 0.0, %v143
    %v182 = vsel %vm139, 0.0, %v146
    %v183 = vsel %vm139, 0.0, %v149
    %v184 = vsel %vm139, 0.0, %v152
    %v185 = vsel %vm139, 0.0, %v155
    %v186 = vsel %vm139, 0.0, %v158
    %v187 = vsel %vm139, 0.0, %v161
    %vm188 = vcmask 1045504
    %v189 = vsel %vm188, %v142, 0.0
    %v190 = vsel %vm188, %v145, 0.0
    %v191 = vsel %vm188, %v148, 0.0
    %v192 = vsel %vm188, %v151, 0.0
    %v193 = vsel %vm188, %v154, 0.0
    %v194 = vsel %vm188, %v157, 0.0
    %v195 = vsel %vm188, %v160, 0.0
    %v196 = vsel %vm188, %v163, 0.0
    %vm197 = vcmask 130048
    %198 = vst.msk [vmem:[#allocation2] sm:$0xff] %vm197, %v180
    %199 = vst.msk [vmem:[#allocation2 + $0x8] sm:$0xff] %vm197, %v189
    %200 = vst.msk [vmem:[#allocation2 + $0x10] sm:$0xff] %vm197, %v181
    %201 = vst.msk [vmem:[#allocation2 + $0x18] sm:$0xff] %vm197, %v190
    %202 = vst.msk [vmem:[#allocation2 + $0x20] sm:$0xff] %vm197, %v182
    %203 = vst.msk [vmem:[#allocation2 + $0x28] sm:$0xff] %vm197, %v191
    %204 = vst.msk [vmem:[#allocation2 + $0x30] sm:$0xff] %vm197, %v183
    %205 = vst.msk [vmem:[#allocation2 + $0x38] sm:$0xff] %vm197, %v192
    %206 = vst.msk [vmem:[#allocation2 + $0x40] sm:$0xff] %vm197, %v184
    %207 = vst.msk [vmem:[#allocation2 + $0x48] sm:$0xff] %vm197, %v193
    %208 = vst.msk [vmem:[#allocation2 + $0x50] sm:$0xff] %vm197, %v185
    %209 = vst.msk [vmem:[#allocation2 + $0x58] sm:$0xff] %vm197, %v194
    %210 = vst.msk [vmem:[#allocation2 + $0x60] sm:$0xff] %vm197, %v186
    %211 = vst.msk [vmem:[#allocation2 + $0x68] sm:$0xff] %vm197, %v195
    %212 = vst.msk [vmem:[#allocation2 + $0x70] sm:$0xff] %vm197, %v187
    %213 = vst.msk [vmem:[#allocation2 + $0x78] sm:$0xff] %vm197, %v196
    // Predicated region
    $region6: #{tpu_custom_call.1} parent=1 // pred_check
      _
    $region7: #{tpu_custom_call.1} parent=1 // pred_check_branch
      %215 = sbr.rel (0) target = $region9
    $region8: #{tpu_custom_call.1} parent=1 // pred_region
      %217 = vsyncadd [#allocation3], 0
      %s218 = sshll.u32 [#allocation2], 4
      %s219 = int_to_ptr.vmem [resolvable:$true] %s218
      %s220 = sshll.u32 %s1, 4
      %s221 = int_to_ptr.hbm [resolvable:$true] %s220
      %226 = dma.vmem_to_hbm [thread:$0]  %s219, 2048, %s221, [#allocation3], 128, 128, 8
    $region9: #{tpu_custom_call.1} parent=1 // pred_fallthru
      _
    // Predicated region
    $region10: #{tpu_custom_call.1} parent=1 // pred_check
      _
    $region11: #{tpu_custom_call.1} parent=1 // pred_check_branch
      %228 = sbr.rel (0) target = $region13
    $region12: #{tpu_custom_call.1} parent=1 // pred_region
      %230 = dma.done [#allocation3], 2048
    $region13: #{tpu_custom_call.1} parent=1 // pred_fallthru
      _
    %231 = vsyncpa [#allocation3], 1

</llo_original>
